<compile_context>
chip_gen: v7x
topology: tpu7x:2x2x1
jax: 0.10.0
libtpu: 0.0.40
codegen_flags: <defaults>
</compile_context>

<pallas_src>
import functools

import jax
import jax.numpy as jnp
from jax.experimental import pallas as pl
from jax.experimental.pallas import tpu as pltpu


# ----------------------------------------------------------------------------
# Kernel
# ----------------------------------------------------------------------------
def _attention_gate_kernel(g_ref, x_ref, wg_ref, wx_ref, wpsi_ref,
                           shift_gx_ref, shift_psi_ref, o_ref):
    """One (batch, spatial-tile) block.

    g_ref        : (1, F_g, TS)   f32    gating signal, channel-major
    x_ref        : (1, F_l, TS)   f32    skip connection, channel-major
    wg_ref       : (F_int, F_g)   bf16   BN-folded W_g
    wx_ref       : (F_int, F_l)   bf16   BN-folded W_x
    wpsi_ref     : (1, F_int)     f32    BN-folded psi conv
    shift_gx_ref : (F_int, 1)     f32    folded shift of W_g-BN + W_x-BN
    shift_psi_ref: (1,)           f32    folded shift of psi-BN (SMEM)
    o_ref        : (1, F_l, TS)   bf16   gated output
    """
    g = g_ref[0]                                   # (F_g, TS) f32
    x = x_ref[0]                                   # (F_l, TS) f32

    # 1x1 convs as channel-mixing matmuls; bf16 operands cast in-kernel,
    # f32 accumulate on the MXU.  Lane dim = spatial tile (multiple of 128).
    g1 = jnp.dot(wg_ref[...], g.astype(wg_ref.dtype),
                 preferred_element_type=jnp.float32)
    x1 = jnp.dot(wx_ref[...], x.astype(wx_ref.dtype),
                 preferred_element_type=jnp.float32)

    # relu(g1 + x1) with the folded BN shifts applied once (f32 epilogue).
    a = jnp.maximum(g1 + x1 + shift_gx_ref[...], 0.0)        # (F_int, TS) f32

    # psi conv in f32 (M=1 -> halved f32 MXU rate is irrelevant, and we avoid
    # a full (F_int, TS) bf16 cast); then sigmoid in f32.
    z = jnp.dot(wpsi_ref[...], a,
                preferred_element_type=jnp.float32) + shift_psi_ref[0]
    psi = jax.nn.sigmoid(z)                                   # (1, TS) f32

    # Gate the skip connection with f32 x (never upcasted from bf16),
    # store the result half-width.
    o_ref[0, :, :] = (x * psi).astype(o_ref.dtype)            # (F_l, TS) bf16


# ----------------------------------------------------------------------------
# Host-side helpers
# ----------------------------------------------------------------------------
def fold_conv1x1_bn(w, b, gamma, beta, mean, var, eps=1e-5):
    """Fold eval-mode BatchNorm into a 1x1 conv.

    w: (C_out, C_in), b: (C_out,).  Returns (w_eff, shift) with
      BN(conv(x)) == w_eff @ x + shift.
    """
    scale = gamma / jnp.sqrt(var + eps)
    w_eff = w * scale[:, None]
    shift = beta + scale * (b - mean)
    return w_eff, shift


def _fold_all(params):
    wg, sg = fold_conv1x1_bn(params["wg"], params["bg"], params["gamma_g"],
                             params["beta_g"], params["mean_g"], params["var_g"])
    wx, sx = fold_conv1x1_bn(params["wx"], params["bx"], params["gamma_x"],
                             params["beta_x"], params["mean_x"], params["var_x"])
    wp, sp = fold_conv1x1_bn(params["wpsi"], params["bpsi"], params["gamma_p"],
                             params["beta_p"], params["mean_p"], params["var_p"])
    return wg, wx, wp, sg + sx, sp


def _round_up(a, b):
    return ((a + b - 1) // b) * b


# Conservative per-kernel VMEM working-set budget and scoped limit.  The
# budget stays well inside v5e/v6e (128 MiB physical) and v7x (64 MiB per TC);
# the raised scoped limit removes v5e's 16 MiB default ceiling.
_VMEM_BUDGET_BYTES = 20 * 1024 * 1024
_VMEM_LIMIT_BYTES = 32 * 1024 * 1024


def _pick_spatial_tile(hw, batch, f_g, f_l, f_int, out_bytes):
    """VMEM-budget-aware spatial tile (multiple of 128) and padded H*W."""
    # Bytes of VMEM needed per spatial element of one tile:
    #   double-buffered f32 inputs + double-buffered output
    #   + in-kernel temps (bf16 input casts, f32 g1/x1/a, f32 out, psi/z).
    bytes_per_elem = (
        2 * (f_g + f_l) * 4          # g, x input buffers (x2 pipelining)
        + 2 * f_l * out_bytes        # output buffers (x2 pipelining)
        + (f_g + f_l) * 2            # bf16 casts of g, x
        + 3 * f_int * 4              # g1, x1, a (f32)
        + f_l * 4                    # f32 gated slab before store cast
        + 16                         # z / psi rows, slack
    )
    ts_max = max(128, (_VMEM_BUDGET_BYTES // bytes_per_elem) // 128 * 128)

    hw128 = _round_up(hw, 128)
    ts = min(ts_max, hw128)

    # v7x: keep >=2 parallel grid programs so both TensorCores get work
    # even for batch-1 inference.
    if batch == 1 and hw128 >= 256 and hw128 // ts < 2:
        ts = _round_up(pl.cdiv(hw128, 2), 128)

    hw_padded = _round_up(hw128, ts)
    return ts, hw_padded


# ----------------------------------------------------------------------------
# Fused forward
# ----------------------------------------------------------------------------
def attention_block(g, x, params, *, out_dtype=jnp.bfloat16):
    """Attention gate forward.  g: (B, F_g, H, W), x: (B, F_l, H, W)  (NCHW)."""
    B, Fg, H, W = g.shape
    Bx, Fl, Hx, Wx = x.shape
    assert (B, H, W) == (Bx, Hx, Wx)
    HW = H * W

    wg, wx, wpsi, shift_gx, shift_psi = _fold_all(params)
    Fint = wg.shape[0]

    out_bytes = jnp.dtype(out_dtype).itemsize
    TS, HWp = _pick_spatial_tile(HW, B, Fg, Fl, Fint, out_bytes)

    # Channel-major, spatial-flattened activations (kept in f32 -- the bf16
    # cast for the matmuls happens inside the kernel).  Zero-pad the spatial
    # axis so every block is a full, lane-dense (multiple-of-128) tile;
    # padded x is zero, so the padded output region is zero and sliced off.
    g2 = g.reshape(B, Fg, HW)
    x2 = x.reshape(B, Fl, HW)
    if HWp != HW:
        g2 = jnp.pad(g2, ((0, 0), (0, 0), (0, HWp - HW)))
        x2 = jnp.pad(x2, ((0, 0), (0, 0), (0, HWp - HW)))

    out = pl.pallas_call(
        _attention_gate_kernel,
        out_shape=jax.ShapeDtypeStruct((B, Fl, HWp), out_dtype),
        grid=(B, HWp // TS),
        in_specs=[
            pl.BlockSpec((1, Fg, TS), lambda b, s: (b, 0, s)),
            pl.BlockSpec((1, Fl, TS), lambda b, s: (b, 0, s)),
            pl.BlockSpec((Fint, Fg), lambda b, s: (0, 0)),
            pl.BlockSpec((Fint, Fl), lambda b, s: (0, 0)),
            pl.BlockSpec((1, Fint), lambda b, s: (0, 0)),
            pl.BlockSpec((Fint, 1), lambda b, s: (0, 0)),
            pl.BlockSpec(memory_space=pltpu.MemorySpace.SMEM),
        ],
        out_specs=pl.BlockSpec((1, Fl, TS), lambda b, s: (b, 0, s)),
        compiler_params=pltpu.CompilerParams(
            dimension_semantics=("parallel", "parallel"),
            vmem_limit_bytes=_VMEM_LIMIT_BYTES),
    )(g2, x2,
      wg.astype(jnp.bfloat16), wx.astype(jnp.bfloat16),
      wpsi.astype(jnp.float32),
      shift_gx.reshape(Fint, 1).astype(jnp.float32),
      shift_psi.reshape(1).astype(jnp.float32))

    if HWp != HW:
        out = out[:, :, :HW]
    return out.reshape(B, Fl, H, W)


# ----------------------------------------------------------------------------
# Pure-JAX reference (mirrors the kernel's bf16 matmul operands / f32
# accumulate / f32 gating) for correctness checking.
# ----------------------------------------------------------------------------
def attention_block_ref(g, x, params, *, out_dtype=jnp.bfloat16):
    B, Fg, H, W = g.shape
    Fl = x.shape[1]
    wg, wx, wpsi, shift_gx, shift_psi = _fold_all(params)

    gf = g.reshape(B, Fg, -1)
    xf = x.reshape(B, Fl, -1)

    g1 = jnp.einsum("of,bfs->bos", wg.astype(jnp.bfloat16),
                    gf.astype(jnp.bfloat16),
                    preferred_element_type=jnp.float32)
    x1 = jnp.einsum("of,bfs->bos", wx.astype(jnp.bfloat16),
                    xf.astype(jnp.bfloat16),
                    preferred_element_type=jnp.float32)
    a = jnp.maximum(g1 + x1 + shift_gx[None, :, None], 0.0)
    z = jnp.einsum("of,bfs->bos", wpsi.astype(jnp.float32), a,
                   preferred_element_type=jnp.float32) + shift_psi[None, :, None]
    psi = jax.nn.sigmoid(z)
    out = (xf * psi).astype(out_dtype)
    return out.reshape(B, Fl, H, W)


# ----------------------------------------------------------------------------
# Main
# ----------------------------------------------------------------------------
if __name__ == "__main__":
    B, F_g, F_l, F_int, H, W = 2, 32, 32, 16, 16, 16

    key = jax.random.PRNGKey(0)
    ks = jax.random.split(key, 12)

    g = jax.random.normal(ks[0], (B, F_g, H, W), jnp.float32)
    x = jax.random.normal(ks[1], (B, F_l, H, W), jnp.float32)

    def bn_params(k, c):
        k1, k2, k3, k4 = jax.random.split(k, 4)
        gamma = jax.random.uniform(k1, (c,), jnp.float32, 0.8, 1.2)
        beta = 0.1 * jax.random.normal(k2, (c,), jnp.float32)
        mean = 0.1 * jax.random.normal(k3, (c,), jnp.float32)
        var = jax.random.uniform(k4, (c,), jnp.float32, 0.5, 1.5)
        return gamma, beta, mean, var

    gamma_g, beta_g, mean_g, var_g = bn_params(ks[2], F_int)
    gamma_x, beta_x, mean_x, var_x = bn_params(ks[3], F_int)
    gamma_p, beta_p, mean_p, var_p = bn_params(ks[4], 1)

    params = {
        # W_g: Conv1x1(F_g -> F_int) + BN
        "wg": 0.2 * jax.random.normal(ks[5], (F_int, F_g), jnp.float32),
        "bg": 0.1 * jax.random.normal(ks[6], (F_int,), jnp.float32),
        "gamma_g": gamma_g, "beta_g": beta_g, "mean_g": mean_g, "var_g": var_g,
        # W_x: Conv1x1(F_l -> F_int) + BN
        "wx": 0.2 * jax.random.normal(ks[7], (F_int, F_l), jnp.float32),
        "bx": 0.1 * jax.random.normal(ks[8], (F_int,), jnp.float32),
        "gamma_x": gamma_x, "beta_x": beta_x, "mean_x": mean_x, "var_x": var_x,
        # psi: Conv1x1(F_int -> 1) + BN + Sigmoid
        "wpsi": 0.2 * jax.random.normal(ks[9], (1, F_int), jnp.float32),
        "bpsi": 0.1 * jax.random.normal(ks[10], (1,), jnp.float32),
        "gamma_p": gamma_p, "beta_p": beta_p, "mean_p": mean_p, "var_p": var_p,
    }

    out = jax.block_until_ready(attention_block(g, x, params))
    ref = jax.block_until_ready(attention_block_ref(g, x, params))

    assert out.shape == (B, F_l, H, W)
    out_f = out.astype(jnp.float32)
    ref_f = ref.astype(jnp.float32)
    max_err = jnp.max(jnp.abs(out_f - ref_f))
    assert jnp.allclose(out_f, ref_f, rtol=2e-2, atol=2e-2), \
        f"max abs err = {max_err}"

    print("KERNEL_OK")
</pallas_src>

<mosaic_0001>
module attributes {stable_mosaic.version = 11 : i64} {
  func.func @_attention_gate_kernel(%arg0: i32, %arg1: i32, %arg2: memref<1x32x256xf32, #tpu.memory_space<vmem>>, %arg3: memref<1x32x256xf32, #tpu.memory_space<vmem>>, %arg4: memref<16x32xbf16, #tpu.memory_space<vmem>>, %arg5: memref<16x32xbf16, #tpu.memory_space<vmem>>, %arg6: memref<1x16xf32, #tpu.memory_space<vmem>>, %arg7: memref<16x1xf32, #tpu.memory_space<vmem>>, %arg8: memref<1xf32, #tpu.memory_space<smem>>, %arg9: memref<1x32x256xbf16, #tpu.memory_space<vmem>>) attributes {dimension_semantics = [#tpu.dimension_semantics<parallel>, #tpu.dimension_semantics<parallel>], iteration_bounds = array<i64: 2, 1>, scalar_prefetch = 0 : i64, scratch_operands = 0 : i64, tpu.core_type = #tpu.core_type<tc>, window_params = [{transform_indices = @transform_0, window_bounds = array<i64: 1, 32, 256>}, {transform_indices = @transform_1, window_bounds = array<i64: 1, 32, 256>}, {pipeline_mode = #tpu.pipeline_mode<synchronous>, transform_indices = @transform_2, window_bounds = array<i64: 16, 32>}, {pipeline_mode = #tpu.pipeline_mode<synchronous>, transform_indices = @transform_3, window_bounds = array<i64: 16, 32>}, {pipeline_mode = #tpu.pipeline_mode<synchronous>, transform_indices = @transform_4, window_bounds = array<i64: 1, 16>}, {pipeline_mode = #tpu.pipeline_mode<synchronous>, transform_indices = @transform_5, window_bounds = array<i64: 16, 1>}, {transform_indices = @transform_6, window_bounds = array<i64: 1>}, {transform_indices = @transform_7, window_bounds = array<i64: 1, 32, 256>}]} {
    %c0 = arith.constant 0 : index
    %c0_0 = arith.constant 0 : index
    %c0_1 = arith.constant 0 : index
    %0 = vector.load %arg2[%c0, %c0_0, %c0_1] : memref<1x32x256xf32, #tpu.memory_space<vmem>>, vector<1x32x256xf32>
    %1 = vector.shape_cast %0 : vector<1x32x256xf32> to vector<32x256xf32>
    %c0_2 = arith.constant 0 : index
    %c0_3 = arith.constant 0 : index
    %c0_4 = arith.constant 0 : index
    %2 = vector.load %arg3[%c0_2, %c0_3, %c0_4] : memref<1x32x256xf32, #tpu.memory_space<vmem>>, vector<1x32x256xf32>
    %3 = vector.shape_cast %2 : vector<1x32x256xf32> to vector<32x256xf32>
    %c0_5 = arith.constant 0 : index
    %c0_6 = arith.constant 0 : index
    %4 = vector.load %arg4[%c0_5, %c0_6] : memref<16x32xbf16, #tpu.memory_space<vmem>>, vector<16x32xbf16>
    %5 = arith.truncf %1 : vector<32x256xf32> to vector<32x256xbf16>
    %cst = arith.constant dense<0.000000e+00> : vector<16x256xf32>
    %6 = tpu.matmul %4, %5, %cst {dimension_numbers = #tpu.dot_dimension_numbers<[1], [0], [0], [1], [0, 0, 1, 1], [], []>} : vector<16x32xbf16>, vector<32x256xbf16>, vector<16x256xf32> -> vector<16x256xf32>
    %c0_7 = arith.constant 0 : index
    %c0_8 = arith.constant 0 : index
    %7 = vector.load %arg5[%c0_7, %c0_8] : memref<16x32xbf16, #tpu.memory_space<vmem>>, vector<16x32xbf16>
    %8 = arith.truncf %3 : vector<32x256xf32> to vector<32x256xbf16>
    %cst_9 = arith.constant dense<0.000000e+00> : vector<16x256xf32>
    %9 = tpu.matmul %7, %8, %cst_9 {dimension_numbers = #tpu.dot_dimension_numbers<[1], [0], [0], [1], [0, 0, 1, 1], [], []>} : vector<16x32xbf16>, vector<32x256xbf16>, vector<16x256xf32> -> vector<16x256xf32>
    %10 = arith.addf %6, %9 : vector<16x256xf32>
    %c0_10 = arith.constant 0 : index
    %c0_11 = arith.constant 0 : index
    %11 = vector.load %arg7[%c0_10, %c0_11] : memref<16x1xf32, #tpu.memory_space<vmem>>, vector<16x1xf32>
    %12 = vector.broadcast %11 : vector<16x1xf32> to vector<16x256xf32>
    %13 = arith.addf %10, %12 : vector<16x256xf32>
    %cst_12 = arith.constant 0.000000e+00 : f32
    %14 = vector.broadcast %cst_12 : f32 to vector<16x256xf32>
    %15 = arith.maximumf %13, %14 : vector<16x256xf32>
    %c0_13 = arith.constant 0 : index
    %c0_14 = arith.constant 0 : index
    %16 = vector.load %arg6[%c0_13, %c0_14] : memref<1x16xf32, #tpu.memory_space<vmem>>, vector<1x16xf32>
    %cst_15 = arith.constant dense<0.000000e+00> : vector<1x256xf32>
    %17 = tpu.matmul %16, %15, %cst_15 {dimension_numbers = #tpu.dot_dimension_numbers<[1], [0], [0], [1], [0, 0, 1, 1], [], []>} : vector<1x16xf32>, vector<16x256xf32>, vector<1x256xf32> -> vector<1x256xf32>
    %c0_16 = arith.constant 0 : index
    %18 = memref.load %arg8[%c0_16] : memref<1xf32, #tpu.memory_space<smem>>
    %19 = vector.broadcast %18 : f32 to vector<1x256xf32>
    %20 = arith.addf %17, %19 : vector<1x256xf32>
    %21 = arith.negf %20 : vector<1x256xf32>
    %22 = math.exp %21 : vector<1x256xf32>
    %cst_17 = arith.constant 1.000000e+00 : f32
    %23 = vector.broadcast %cst_17 : f32 to vector<1x256xf32>
    %24 = arith.addf %23, %22 : vector<1x256xf32>
    %25 = arith.divf %23, %24 : vector<1x256xf32>
    %26 = vector.broadcast %25 : vector<1x256xf32> to vector<32x256xf32>
    %27 = arith.mulf %3, %26 : vector<32x256xf32>
    %28 = arith.truncf %27 : vector<32x256xf32> to vector<32x256xbf16>
    %c0_18 = arith.constant 0 : index
    %c0_19 = arith.constant 0 : index
    %c0_20 = arith.constant 0 : index
    %29 = vector.load %arg9[%c0_18, %c0_19, %c0_20] : memref<1x32x256xbf16, #tpu.memory_space<vmem>>, vector<1x32x256xbf16>
    %30 = vector.shape_cast %29 : vector<1x32x256xbf16> to vector<32x256xbf16>
    %31 = vector.shape_cast %28 : vector<32x256xbf16> to vector<1x32x256xbf16>
    tpu.vector_store %arg9[%c0_18, %c0_19, %c0_20], %31 {strides = array<i32>} : memref<1x32x256xbf16, #tpu.memory_space<vmem>>, vector<1x32x256xbf16>,
    return
  }
  func.func @transform_0(%arg0: i32, %arg1: i32) -> (i32, i32, i32) {
    %c0_i32 = arith.constant 0 : i32
    %c0_i32_0 = arith.constant 0 : i32
    return %arg0, %c0_i32, %arg1 : i32, i32, i32
  }
  func.func @transform_1(%arg0: i32, %arg1: i32) -> (i32, i32, i32) {
    %c0_i32 = arith.constant 0 : i32
    %c0_i32_0 = arith.constant 0 : i32
    return %arg0, %c0_i32, %arg1 : i32, i32, i32
  }
  func.func @transform_2(%arg0: i32, %arg1: i32) -> (i32, i32) {
    %c0_i32 = arith.constant 0 : i32
    %c0_i32_0 = arith.constant 0 : i32
    %c0_i32_1 = arith.constant 0 : i32
    return %c0_i32, %c0_i32_0 : i32, i32
  }
  func.func @transform_3(%arg0: i32, %arg1: i32) -> (i32, i32) {
    %c0_i32 = arith.constant 0 : i32
    %c0_i32_0 = arith.constant 0 : i32
    %c0_i32_1 = arith.constant 0 : i32
    return %c0_i32, %c0_i32_0 : i32, i32
  }
  func.func @transform_4(%arg0: i32, %arg1: i32) -> (i32, i32) {
    %c0_i32 = arith.constant 0 : i32
    %c0_i32_0 = arith.constant 0 : i32
    %c0_i32_1 = arith.constant 0 : i32
    return %c0_i32, %c0_i32_0 : i32, i32
  }
  func.func @transform_5(%arg0: i32, %arg1: i32) -> (i32, i32) {
    %c0_i32 = arith.constant 0 : i32
    %c0_i32_0 = arith.constant 0 : i32
    %c0_i32_1 = arith.constant 0 : i32
    return %c0_i32, %c0_i32_0 : i32, i32
  }
  func.func @transform_6(%arg0: i32, %arg1: i32) -> i32 {
    %c0_i32 = arith.constant 0 : i32
    %c0_i32_0 = arith.constant 0 : i32
    return %c0_i32 : i32
  }
  func.func @transform_7(%arg0: i32, %arg1: i32) -> (i32, i32, i32) {
    %c0_i32 = arith.constant 0 : i32
    %c0_i32_0 = arith.constant 0 : i32
    return %arg0, %c0_i32, %arg1 : i32, i32, i32
  }
}

</mosaic_0001>

<llo_original>
// kernel: tpu_custom_call.1
$region0: #{tpu_custom_call.1}
  #allocation0 [shape = 'u32[]', space=smem, size = 0x4, offset = 0x4, fixed_abs, tag = 'smem constant byte address 0x4 - core index']
  #allocation1 [shape = 'u32[144,128]{1,0:T(1,128)}', space=vmem, size = 0x12000, scoped, tag = 'internal scratch']
  #allocation2 [shape = 'f32[1]{0:T(128)S(6)}', space=smem, size = 0x200, scoped, tag = 'scoped memory for tpu_custom_call.1']
  %s0 = inlined_call_operand.hbm [shape: f32[2,32,256], index: 0, kind: input, shape index: {}]
  %s1 = inlined_call_operand.hbm [shape: f32[2,32,256], index: 1, kind: input, shape index: {}]
  %s2 = inlined_call_operand.vmem [shape: bf16[16,32], index: 2, kind: input, shape index: {}]
  %s3 = inlined_call_operand.vmem [shape: bf16[16,32], index: 3, kind: input, shape index: {}]
  %s4 = inlined_call_operand.vmem [shape: f32[1,16], index: 4, kind: input, shape index: {}]
  %s5 = inlined_call_operand.vmem [shape: f32[16,1], index: 5, kind: input, shape index: {}]
  %s6 = inlined_call_operand.<no memory space> [shape: f32[1], index: 6, kind: input, shape index: {}]
  %s7 = inlined_call_operand.hbm [shape: bf16[2,32,256], index: 7, kind: output, shape index: {}]
  %s8 = sld [smem:[#allocation0]]
  $region69: #{tpu_custom_call.1} parent=0
    _
  %s10 = ssub.s32 1, %s8
  %s11 = scalar_select 0, %s10, %s8
  %12 = sst [smem:[#allocation2]] %s6
  $region1: #{tpu_custom_call.1} parent=0
    #allocation3 [shape = 'u8[65536]{0}', space=vmem, size = 0x10000, scoped, tag = 'input window, operand 0']
    #allocation4 [shape = 's32[2]{0}', space=sflag, size = 0x8, scoped, tag = 'scoped memory for tpu_custom_call.1']
    #allocation5 [shape = 's32[2]{0}', space=sflag, size = 0x8, scoped, tag = 'scoped memory for tpu_custom_call.1']
    #allocation6 [shape = 'u8[65536]{0}', space=vmem, size = 0x10000, scoped, tag = 'input window, operand 1']
    #allocation7 [shape = 's32[2]{0}', space=sflag, size = 0x8, scoped, tag = 'scoped memory for tpu_custom_call.1']
    #allocation8 [shape = 'u8[32768]{0}', space=vmem, size = 0x8000, scoped, tag = 'output window, operand 0']
    %13 = vsyncpa [#allocation4], 0
    %s14 = scalar_lea.sflag [#allocation4], 1
    %15 = vsyncpa %s14, 0
    %16 = vsyncpa [#allocation7], 0
    %s17 = scalar_lea.sflag [#allocation7], 1
    %18 = vsyncpa %s17, 0
    %19 = vsyncpa [#allocation5], 0
    %s20 = scalar_lea.sflag [#allocation5], 1
    %21 = vsyncpa %s20, 0
    loop: start=0, step=1, limit=4
    $region2: #{tpu_custom_call.1} parent=1 // loop_pre_header
      _
    $region3: #{tpu_custom_call.1} parent=1 // loop_header
      %s23 = sphi 0, %s27
      %p24 = scmp.ge.s32.totalorder %s23, 4
      %s30 = sphi 0, %s42
      %s31 = sphi 0, %s38
      %s32 = sphi 0, %s30
      %s33 = sphi 0, %s31
      %s34 = sphi 0, %s32
      %s35 = sphi 0, %s33
      %s47 = sphi 0, %s49
      %s50 = sphi 0, %s47
      %s51 = sphi 0, %s50
      %s67 = sphi 0, %s51
      %s75 = sphi 0, %s77
      %s78 = sphi 0, %s75
      %s79 = sphi 0, %s78
      %s95 = sphi 0, %s79
      %s99 = sphi 0, %s99
      %s101 = sphi 0, %s99
      %s102 = sphi 0, %s101
      %s116 = sphi 0, %s102
      %s120 = sphi 0, %s120
      %s122 = sphi 0, %s120
      %s123 = sphi 0, %s122
      %s137 = sphi 0, %s123
      %s141 = sphi 0, %s141
      %s143 = sphi 0, %s141
      %s144 = sphi 0, %s143
      %s158 = sphi 0, %s144
      %s162 = sphi 0, %s162
      %s164 = sphi 0, %s162
      %s165 = sphi 0, %s164
      %s179 = sphi 0, %s165
      %s183 = sphi 0, %s183
      %s185 = sphi 0, %s183
      %s186 = sphi 0, %s185
      %s200 = sphi 0, %s186
      %s208 = sphi 0, %s210
      %s211 = sphi 0, %s208
      %s212 = sphi 0, %s211
      %s228 = sphi 0, %s212
    $region4: #{tpu_custom_call.1} parent=1 // loop_header_branch
      %26 = sbr.rel (%p24) target = $region8
    $region5: #{tpu_custom_call.1} parent=1 // loop_body
      %s28 = ssub.s32 %s23, 1
      %s29 = ssub.s32 %s23, 2
      %s36 = sadd.s32 1, %s31
      %p37 = scmp.ge.s32.totalorder %s36, 1
      %s38 = scalar_select %p37, 0, %s36
      %s39 = sadd.s32 1, %s30
      %s40 = scalar_select %p37, %s39, %s30
      %p41 = scmp.ge.s32.totalorder %s40, 2
      %s42 = scalar_select %p41, 0, %s40
      %s43 = ssub.s32 %s30, %s42
      %s44 = ssub.s32 %s31, %s38
      %s45 = sor.u32 %s43, %s44
      %p46 = scmp.eq.s32.totalorder %s45, 0
      %s48 = sadd.s32 %s47, 1
      %s49 = scalar_select %p46, %s47, %s48
      %p52 = pneg %p46
      %p53 = scmp.eq.s32.totalorder %s23, 1
      %p54 = por %p52, %p53
      %p55 = scmp.ne.s32.totalorder %s47, %s50
      %p56 = scmp.eq.s32.totalorder %s23, 0
      %p57 = por %p55, %p56
      %p58 = scmp.ne.s32.totalorder %s47, %s50
      %p59 = scmp.eq.s32.totalorder %s28, 1
      %p60 = por %p58, %p59
      %p61 = scmp.ne.s32.totalorder %s50, %s51
      %p62 = scmp.eq.s32.totalorder %s28, 0
      %p63 = por %p61, %p62
      %p64 = scmp.ne.s32.totalorder %s50, %s51
      %p65 = scmp.eq.s32.totalorder %s29, 1
      %p66 = por %p64, %p65
      %p68 = scmp.ne.s32.totalorder %s51, %s67
      %p69 = scmp.eq.s32.totalorder %s29, 0
      %p70 = por %p68, %p69
      %s71 = ssub.s32 %s30, %s42
      %s72 = ssub.s32 %s31, %s38
      %s73 = sor.u32 %s71, %s72
      %p74 = scmp.eq.s32.totalorder %s73, 0
      %s76 = sadd.s32 %s75, 1
      %s77 = scalar_select %p74, %s75, %s76
      %p80 = pneg %p74
      %p81 = scmp.eq.s32.totalorder %s23, 1
      %p82 = por %p80, %p81
      %p83 = scmp.ne.s32.totalorder %s75, %s78
      %p84 = scmp.eq.s32.totalorder %s23, 0
      %p85 = por %p83, %p84
      %p86 = scmp.ne.s32.totalorder %s75, %s78
      %p87 = scmp.eq.s32.totalorder %s28, 1
      %p88 = por %p86, %p87
      %p89 = scmp.ne.s32.totalorder %s78, %s79
      %p90 = scmp.eq.s32.totalorder %s28, 0
      %p91 = por %p89, %p90
      %p92 = scmp.ne.s32.totalorder %s78, %s79
      %p93 = scmp.eq.s32.totalorder %s29, 1
      %p94 = por %p92, %p93
      %p96 = scmp.ne.s32.totalorder %s79, %s95
      %p97 = scmp.eq.s32.totalorder %s29, 0
      %p98 = por %p96, %p97
      %s100 = sadd.s32 %s99, 1
      %p103 = scmp.eq.s32.totalorder %s23, 1
      %p104 = scmp.ne.s32.totalorder %s99, %s101
      %p105 = scmp.eq.s32.totalorder %s23, 0
      %p106 = por %p104, %p105
      %p107 = scmp.ne.s32.totalorder %s99, %s101
      %p108 = scmp.eq.s32.totalorder %s28, 1
      %p109 = por %p107, %p108
      %p110 = scmp.ne.s32.totalorder %s101, %s102
      %p111 = scmp.eq.s32.totalorder %s28, 0
      %p112 = por %p110, %p111
      %p113 = scmp.ne.s32.totalorder %s101, %s102
      %p114 = scmp.eq.s32.totalorder %s29, 1
      %p115 = por %p113, %p114
      %p117 = scmp.ne.s32.totalorder %s102, %s116
      %p118 = scmp.eq.s32.totalorder %s29, 0
      %p119 = por %p117, %p118
      %s121 = sadd.s32 %s120, 1
      %p124 = scmp.eq.s32.totalorder %s23, 1
      %p125 = scmp.ne.s32.totalorder %s120, %s122
      %p126 = scmp.eq.s32.totalorder %s23, 0
      %p127 = por %p125, %p126
      %p128 = scmp.ne.s32.totalorder %s120, %s122
      %p129 = scmp.eq.s32.totalorder %s28, 1
      %p130 = por %p128, %p129
      %p131 = scmp.ne.s32.totalorder %s122, %s123
      %p132 = scmp.eq.s32.totalorder %s28, 0
      %p133 = por %p131, %p132
      %p134 = scmp.ne.s32.totalorder %s122, %s123
      %p135 = scmp.eq.s32.totalorder %s29, 1
      %p136 = por %p134, %p135
      %p138 = scmp.ne.s32.totalorder %s123, %s137
      %p139 = scmp.eq.s32.totalorder %s29, 0
      %p140 = por %p138, %p139
      %s142 = sadd.s32 %s141, 1
      %p145 = scmp.eq.s32.totalorder %s23, 1
      %p146 = scmp.ne.s32.totalorder %s141, %s143
      %p147 = scmp.eq.s32.totalorder %s23, 0
      %p148 = por %p146, %p147
      %p149 = scmp.ne.s32.totalorder %s141, %s143
      %p150 = scmp.eq.s32.totalorder %s28, 1
      %p151 = por %p149, %p150
      %p152 = scmp.ne.s32.totalorder %s143, %s144
      %p153 = scmp.eq.s32.totalorder %s28, 0
      %p154 = por %p152, %p153
      %p155 = scmp.ne.s32.totalorder %s143, %s144
      %p156 = scmp.eq.s32.totalorder %s29, 1
      %p157 = por %p155, %p156
      %p159 = scmp.ne.s32.totalorder %s144, %s158
      %p160 = scmp.eq.s32.totalorder %s29, 0
      %p161 = por %p159, %p160
      %s163 = sadd.s32 %s162, 1
      %p166 = scmp.eq.s32.totalorder %s23, 1
      %p167 = scmp.ne.s32.totalorder %s162, %s164
      %p168 = scmp.eq.s32.totalorder %s23, 0
      %p169 = por %p167, %p168
      %p170 = scmp.ne.s32.totalorder %s162, %s164
      %p171 = scmp.eq.s32.totalorder %s28, 1
      %p172 = por %p170, %p171
      %p173 = scmp.ne.s32.totalorder %s164, %s165
      %p174 = scmp.eq.s32.totalorder %s28, 0
      %p175 = por %p173, %p174
      %p176 = scmp.ne.s32.totalorder %s164, %s165
      %p177 = scmp.eq.s32.totalorder %s29, 1
      %p178 = por %p176, %p177
      %p180 = scmp.ne.s32.totalorder %s165, %s179
      %p181 = scmp.eq.s32.totalorder %s29, 0
      %p182 = por %p180, %p181
      %s184 = sadd.s32 %s183, 1
      %p187 = scmp.eq.s32.totalorder %s23, 1
      %p188 = scmp.ne.s32.totalorder %s183, %s185
      %p189 = scmp.eq.s32.totalorder %s23, 0
      %p190 = por %p188, %p189
      %p191 = scmp.ne.s32.totalorder %s183, %s185
      %p192 = scmp.eq.s32.totalorder %s28, 1
      %p193 = por %p191, %p192
      %p194 = scmp.ne.s32.totalorder %s185, %s186
      %p195 = scmp.eq.s32.totalorder %s28, 0
      %p196 = por %p194, %p195
      %p197 = scmp.ne.s32.totalorder %s185, %s186
      %p198 = scmp.eq.s32.totalorder %s29, 1
      %p199 = por %p197, %p198
      %p201 = scmp.ne.s32.totalorder %s186, %s200
      %p202 = scmp.eq.s32.totalorder %s29, 0
      %p203 = por %p201, %p202
      %s204 = ssub.s32 %s30, %s42
      %s205 = ssub.s32 %s31, %s38
      %s206 = sor.u32 %s204, %s205
      %p207 = scmp.eq.s32.totalorder %s206, 0
      %s209 = sadd.s32 %s208, 1
      %s210 = scalar_select %p207, %s208, %s209
      %p213 = pneg %p207
      %p214 = scmp.eq.s32.totalorder %s23, 1
      %p215 = por %p213, %p214
      %p216 = scmp.ne.s32.totalorder %s208, %s211
      %p217 = scmp.eq.s32.totalorder %s23, 0
      %p218 = por %p216, %p217
      %p219 = scmp.ne.s32.totalorder %s208, %s211
      %p220 = scmp.eq.s32.totalorder %s28, 1
      %p221 = por %p219, %p220
      %p222 = scmp.ne.s32.totalorder %s211, %s212
      %p223 = scmp.eq.s32.totalorder %s28, 0
      %p224 = por %p222, %p223
      %p225 = scmp.ne.s32.totalorder %s211, %s212
      %p226 = scmp.eq.s32.totalorder %s29, 1
      %p227 = por %p225, %p226
      %p229 = scmp.ne.s32.totalorder %s212, %s228
      %p230 = scmp.eq.s32.totalorder %s29, 0
      %p231 = por %p229, %p230
      %p232 = scmp.le.s32.totalorder 1, %s23
      %p233 = scmp.lt.s32.totalorder %s23, 3
      %p234 = pnand %p232, %p233
      %p235 = pneg %p234
      // Predicated region
      $region9: #{tpu_custom_call.1} parent=5 // pred_check
        _
      $region10: #{tpu_custom_call.1} parent=5 // pred_check_branch
        %237 = sbr.rel (%p234) target = $region12
      $region11: #{tpu_custom_call.1} parent=5 // pred_region
        %s238 = ssub.s32 %s23, 1
        // Predicated region
        $region13: #{tpu_custom_call.1} parent=11 // pred_check
          %p239 = pneg %p112
        $region14: #{tpu_custom_call.1} parent=11 // pred_check_branch
          %241 = sbr.rel (%p239) target = $region16
        $region15: #{tpu_custom_call.1} parent=11 // pred_region
          _
        $region16: #{tpu_custom_call.1} parent=11 // pred_fallthru
          _
        // Predicated region
        $region17: #{tpu_custom_call.1} parent=11 // pred_check
          %p242 = pneg %p133
        $region18: #{tpu_custom_call.1} parent=11 // pred_check_branch
          %244 = sbr.rel (%p242) target = $region20
        $region19: #{tpu_custom_call.1} parent=11 // pred_region
          _
        $region20: #{tpu_custom_call.1} parent=11 // pred_fallthru
          _
        // Predicated region
        $region21: #{tpu_custom_call.1} parent=11 // pred_check
          %p245 = pneg %p154
        $region22: #{tpu_custom_call.1} parent=11 // pred_check_branch
          %247 = sbr.rel (%p245) target = $region24
        $region23: #{tpu_custom_call.1} parent=11 // pred_region
          _
        $region24: #{tpu_custom_call.1} parent=11 // pred_fallthru
          _
        // Predicated region
        $region25: #{tpu_custom_call.1} parent=11 // pred_check
          %p248 = pneg %p175
        $region26: #{tpu_custom_call.1} parent=11 // pred_check_branch
          %250 = sbr.rel (%p248) target = $region28
        $region27: #{tpu_custom_call.1} parent=11 // pred_region
          _
        $region28: #{tpu_custom_call.1} parent=11 // pred_fallthru
          _
        // Predicated region
        $region29: #{tpu_custom_call.1} parent=11 // pred_check
          %p251 = pneg %p196
        $region30: #{tpu_custom_call.1} parent=11 // pred_check_branch
          %253 = sbr.rel (%p251) target = $region32
        $region31: #{tpu_custom_call.1} parent=11 // pred_region
          _
        $region32: #{tpu_custom_call.1} parent=11 // pred_fallthru
          _
      $region12: #{tpu_custom_call.1} parent=5 // pred_fallthru
        _
      %p254 = scmp.lt.s32.totalorder %s23, 2
      // Predicated region
      $region33: #{tpu_custom_call.1} parent=5 // pred_check
        %p255 = pneg %p254
      $region34: #{tpu_custom_call.1} parent=5 // pred_check_branch
        %257 = sbr.rel (%p255) target = $region36
      $region35: #{tpu_custom_call.1} parent=5 // pred_region
        // Predicated region
        $region37: #{tpu_custom_call.1} parent=35 // pred_check
          %p258 = pneg %p57
        $region38: #{tpu_custom_call.1} parent=35 // pred_check_branch
          %260 = sbr.rel (%p258) target = $region40
        $region39: #{tpu_custom_call.1} parent=35 // pred_region
          %s261 = sand.u32 %s47, 1
          %s262 = scalar_lea.sflag [#allocation4], %s261
          %s263 = sand.u32 %s47, 1
          %s264 = smul.addr %s263, 64
          %s265 = scalar_lea.vmem [#allocation3], %s264
          %s266 = smul.u32 2, %s31
          %s268 = ssub.s32 1024, 1024
          %269 = vsyncadd %s262, %s268
          %s270 = smul.addr %s30, 8
          %s271 = sadd.s32 %s266, %s270
          %s272 = smul.addr %s271, 128
          %s273 = scalar_lea.hbm %s0, %s272
          %s274 = sshll.u32 %s265, 4
          %s275 = int_to_ptr.vmem [resolvable:$true] %s274
          %280 = dma.hbm_to_vmem [thread:$0]  %s273, 1024, %s275, %s262, 256, 256, 16
        $region40: #{tpu_custom_call.1} parent=35 // pred_fallthru
          _
        // Predicated region
        $region41: #{tpu_custom_call.1} parent=35 // pred_check
          %p281 = pneg %p85
        $region42: #{tpu_custom_call.1} parent=35 // pred_check_branch
          %283 = sbr.rel (%p281) target = $region44
        $region43: #{tpu_custom_call.1} parent=35 // pred_region
          %s284 = sand.u32 %s75, 1
          %s285 = scalar_lea.sflag [#allocation7], %s284
          %s286 = sand.u32 %s75, 1
          %s287 = smul.addr %s286, 64
          %s288 = scalar_lea.vmem [#allocation6], %s287
          %s289 = smul.u32 2, %s31
          %s291 = ssub.s32 1024, 1024
          %292 = vsyncadd %s285, %s291
          %s293 = smul.addr %s30, 8
          %s294 = sadd.s32 %s289, %s293
          %s295 = smul.addr %s294, 128
          %s296 = scalar_lea.hbm %s1, %s295
          %s297 = sshll.u32 %s288, 4
          %s298 = int_to_ptr.vmem [resolvable:$true] %s297
          %303 = dma.hbm_to_vmem [thread:$0]  %s296, 1024, %s298, %s285, 256, 256, 16
        $region44: #{tpu_custom_call.1} parent=35 // pred_fallthru
          _
      $region36: #{tpu_custom_call.1} parent=5 // pred_fallthru
        _
      %p304 = scmp.le.s32.totalorder 1, %s23
      %p305 = scmp.lt.s32.totalorder %s23, 3
      %p306 = pnand %p304, %p305
      %p307 = pneg %p306
      // Predicated region
      $region45: #{tpu_custom_call.1} parent=5 // pred_check
        _
      $region46: #{tpu_custom_call.1} parent=5 // pred_check_branch
        %309 = sbr.rel (%p306) target = $region48
      $region47: #{tpu_custom_call.1} parent=5 // pred_region
        %s310 = ssub.s32 %s23, 1
        %s311 = sand.u32 %s50, 1
        %s312 = scalar_lea.sflag [#allocation4], %s311
        %s313 = sand.u32 %s50, 1
        %s314 = smul.addr %s313, 64
        %s315 = scalar_lea.vmem [#allocation3], %s314
        // Predicated region
        $region49: #{tpu_custom_call.1} parent=47 // pred_check
          %p316 = pneg %p63
        $region50: #{tpu_custom_call.1} parent=47 // pred_check_branch
          %318 = sbr.rel (%p316) target = $region52
        $region51: #{tpu_custom_call.1} parent=47 // pred_region
          %319 = dma.done %s312, 1024
        $region52: #{tpu_custom_call.1} parent=47 // pred_fallthru
          _
        %s320 = sand.u32 %s78, 1
        %s321 = scalar_lea.sflag [#allocation7], %s320
        %s322 = sand.u32 %s78, 1
        %s323 = smul.addr %s322, 64
        %s324 = scalar_lea.vmem [#allocation6], %s323
        // Predicated region
        $region53: #{tpu_custom_call.1} parent=47 // pred_check
          %p325 = pneg %p91
        $region54: #{tpu_custom_call.1} parent=47 // pred_check_branch
          %327 = sbr.rel (%p325) target = $region56
        $region55: #{tpu_custom_call.1} parent=47 // pred_region
          %328 = dma.done %s321, 1024
        $region56: #{tpu_custom_call.1} parent=47 // pred_fallthru
          _
        %s329 = sand.u32 %s50, 1
        %s330 = scalar_lea.sflag [#allocation4], %s329
        %s331 = sand.u32 %s50, 1
        %s332 = smul.addr %s331, 64
        %s333 = scalar_lea.vmem [#allocation3], %s332
        %p334 = pneg %p63
        %p335 = pneg %p60
        %s336 = sand.u32 %s78, 1
        %s337 = scalar_lea.sflag [#allocation7], %s336
        %s338 = sand.u32 %s78, 1
        %s339 = smul.addr %s338, 64
        %s340 = scalar_lea.vmem [#allocation6], %s339
        %p341 = pneg %p91
        %p342 = pneg %p88
        %p343 = pneg %p112
        %p344 = pneg %p109
        %p345 = pneg %p133
        %p346 = pneg %p130
        %p347 = pneg %p154
        %p348 = pneg %p151
        %p349 = pneg %p175
        %p350 = pneg %p172
        %p351 = pneg %p196
        %p352 = pneg %p193
        %p353 = pneg %p224
        %p354 = pneg %p221
        %s355 = sand.u32 %s211, 1
        %s356 = scalar_lea.sflag [#allocation5], %s355
        %s357 = sand.u32 %s211, 1
        %s358 = smul.addr %s357, 32
        %s359 = scalar_lea.vmem [#allocation8], %s358
        %s360 = smul.u32 2, %s33
        %s361 = smul.u32 2, %s33
        %s362 = smul.u32 2, %s33
        %v364 = vld [vmem:[%s315] sm:$0xff]
        %v365 = vld [vmem:[%s315 + $0x8] sm:$0xff]
        %v366 = vld [vmem:[%s315 + $0x10] sm:$0xff]
        %v367 = vld [vmem:[%s315 + $0x18] sm:$0xff]
        %v368 = vld [vmem:[%s315 + $0x20] sm:$0xff]
        %v369 = vld [vmem:[%s315 + $0x28] sm:$0xff]
        %v370 = vld [vmem:[%s315 + $0x30] sm:$0xff]
        %v371 = vld [vmem:[%s315 + $0x38] sm:$0xff]
        %v372 = vld [vmem:[%s324] sm:$0xff]
        %v373 = vld [vmem:[%s324 + $0x8] sm:$0xff]
        %v374 = vld [vmem:[%s324 + $0x10] sm:$0xff]
        %v375 = vld [vmem:[%s324 + $0x18] sm:$0xff]
        %v376 = vld [vmem:[%s324 + $0x20] sm:$0xff]
        %v377 = vld [vmem:[%s324 + $0x28] sm:$0xff]
        %v378 = vld [vmem:[%s324 + $0x30] sm:$0xff]
        %v379 = vld [vmem:[%s324 + $0x38] sm:$0xff]
        %v380 = vld [vmem:[%s2] sm:$0xf]
        %v381 = vld [vmem:[%s2 + $0x4] sm:$0xf]
        %v382 = vpack.c.bf16 %v366, %v364
        %v383 = vpack.c.bf16 %v367, %v365
        %v384 = vpack.c.bf16 %v370, %v368
        %v385 = vpack.c.bf16 %v371, %v369
        %v386 = vld [vmem:[%s3] sm:$0xf]
        %v387 = vld [vmem:[%s3 + $0x4] sm:$0xf]
        %v388 = vpack.c.bf16 %v374, %v372
        %v389 = vpack.c.bf16 %v375, %v373
        %v390 = vpack.c.bf16 %v378, %v376
        %v391 = vpack.c.bf16 %v379, %v377
        %v394 = vunpack.c.l.b16 %v386
        %v395 = vunpack.c.l.b16 %v387
        %v396 = vpack.c.b16 %v395, %v394
        %vm397 = vcmask 261120
        %v399 = vsel %vm397, %v396, 0
        %401 = vmatprep.subr.bf16.mxu0 %v389
        %402 = vmatpush1.bf16.msra.mxu0 %v388
        %403 = vmatprep.subr.bf16.mxu0 %v391
        %404 = vmatpush1.bf16.msra.mxu0 %v390
        %405 = vmatprep.subr.bf16.mxu0 0
        %406 = vmatpush1.bf16.msra.mxu0 0
        %407 = vmatprep.subr.bf16.mxu0 0
        %408 = vmatpush1.bf16.msra.mxu0 0
        %409 = vmatprep.subr.bf16.mxu0 0
        %410 = vmatpush1.bf16.msra.mxu0 0
        %411 = vmatprep.subr.bf16.mxu0 0
        %412 = vmatpush1.bf16.msra.mxu0 0
        %413 = vmatprep.subr.bf16.mxu0 0
        %414 = vmatpush1.bf16.msra.mxu0 0
        %415 = vmatprep.subr.bf16.mxu0 0
        %416 = vmatpush1.bf16.msra.mxu0 0
        %417 = vmatprep.subr.bf16.mxu0 0
        %418 = vmatpush1.bf16.msra.mxu0 0
        %419 = vmatprep.subr.bf16.mxu0 0
        %420 = vmatpush1.bf16.msra.mxu0 0
        %421 = vmatprep.subr.bf16.mxu0 0
        %422 = vmatpush1.bf16.msra.mxu0 0
        %423 = vmatprep.subr.bf16.mxu0 0
        %424 = vmatpush1.bf16.msra.mxu0 0
        %425 = vmatprep.subr.bf16.mxu0 0
        %426 = vmatpush1.bf16.msra.mxu0 0
        %427 = vmatprep.subr.bf16.mxu0 0
        %428 = vmatpush1.bf16.msra.mxu0 0
        %429 = vmatprep.subr.bf16.mxu0 0
        %430 = vmatpush1.bf16.msra.mxu0 0
        %431 = vmatprep.subr.bf16.mxu0 0
        %432 = vmatpush1.bf16.msra.mxu0 0
        %433 = vmatprep.mubr.bf16.mxu0 0
        %434 = vmatmul.mubr.bf16.gmra.mrb[0].mxu0 %v399
        %v435 = vpop.f32.mrb[0].mxu0
        %v436 = vadd.f32 0.0, %v435
        %v437 = vpop.f32.mrb[0].mxu0
        %v438 = vadd.f32 0.0, %v437
        %v439 = vpop.f32.mrb[0].mxu0
        %v440 = vadd.f32 0.0, %v439
        %v441 = vpop.f32.mrb[0].mxu0
        %v442 = vadd.f32 0.0, %v441
        %443 = vdwg.mxu0
        %v446 = vunpack.c.l.b16 %v380
        %v447 = vunpack.c.l.b16 %v381
        %v448 = vpack.c.b16 %v447, %v446
        %v450 = vsel %vm397, %v448, 0
        %452 = vmatprep.subr.bf16.mxu0 %v383
        %453 = vmatpush1.bf16.msra.mxu0 %v382
        %454 = vmatprep.subr.bf16.mxu0 %v385
        %455 = vmatpush1.bf16.msra.mxu0 %v384
        %456 = vmatprep.subr.bf16.mxu0 0
        %457 = vmatpush1.bf16.msra.mxu0 0
        %458 = vmatprep.subr.bf16.mxu0 0
        %459 = vmatpush1.bf16.msra.mxu0 0
        %460 = vmatprep.subr.bf16.mxu0 0
        %461 = vmatpush1.bf16.msra.mxu0 0
        %462 = vmatprep.subr.bf16.mxu0 0
        %463 = vmatpush1.bf16.msra.mxu0 0
        %464 = vmatprep.subr.bf16.mxu0 0
        %465 = vmatpush1.bf16.msra.mxu0 0
        %466 = vmatprep.subr.bf16.mxu0 0
        %467 = vmatpush1.bf16.msra.mxu0 0
        %468 = vmatprep.subr.bf16.mxu0 0
        %469 = vmatpush1.bf16.msra.mxu0 0
        %470 = vmatprep.subr.bf16.mxu0 0
        %471 = vmatpush1.bf16.msra.mxu0 0
        %472 = vmatprep.subr.bf16.mxu0 0
        %473 = vmatpush1.bf16.msra.mxu0 0
        %474 = vmatprep.subr.bf16.mxu0 0
        %475 = vmatpush1.bf16.msra.mxu0 0
        %476 = vmatprep.subr.bf16.mxu0 0
        %477 = vmatpush1.bf16.msra.mxu0 0
        %478 = vmatprep.subr.bf16.mxu0 0
        %479 = vmatpush1.bf16.msra.mxu0 0
        %480 = vmatprep.subr.bf16.mxu0 0
        %481 = vmatpush1.bf16.msra.mxu0 0
        %482 = vmatprep.subr.bf16.mxu0 0
        %483 = vmatpush1.bf16.msra.mxu0 0
        %484 = vmatprep.mubr.bf16.mxu0 0
        %485 = vmatmul.mubr.bf16.gmra.mrb[0].mxu0 %v450
        %v486 = vpop.f32.mrb[0].mxu0
        %v487 = vadd.f32 %v436, %v486
        %v488 = vpop.f32.mrb[0].mxu0
        %v489 = vadd.f32 %v438, %v488
        %v490 = vpop.f32.mrb[0].mxu0
        %v491 = vadd.f32 %v440, %v490
        %v492 = vpop.f32.mrb[0].mxu0
        %v493 = vadd.f32 %v442, %v492
        %494 = vdwg.mxu0
        %v495 = vld [vmem:[%s5] sm:$0xff]
        %v496 = vld [vmem:[%s5 + $0x8] sm:$0xff]
        %498 = vset.pattern.permute.xlu0 0
        %499 = vperm.xlu0 %498, %v495
        %v500 = vpop.permute.xlu0 %499
        %503 = vset.pattern.permute.xlu0 0
        %504 = vperm.xlu0 %503, %v496
        %v505 = vpop.permute.xlu0 %504
        %v507 = vadd.f32 %v487, %v500
        %v508 = vadd.f32 %v489, %v500
        %v509 = vadd.f32 %v491, %v505
        %v510 = vadd.f32 %v493, %v505
        %v511 = vmax.f32 %v507, 0.0
        %v512 = vmax.f32 %v508, 0.0
        %v513 = vmax.f32 %v509, 0.0
        %v514 = vmax.f32 %v510, 0.0
        %v515 = vld [vmem:[%s4] sm:$0x1]
        %s516 = sld [smem:[#allocation2]]
        %v517 = vstv %s516
        %vm518 = vcmask 130048
        %v520 = vsel %vm518, %v515, 0
        %522 = vmatprep.subr.mxu0 %v512
        %523 = vmatpush1.msra.mxu0 %v511
        %524 = vmatprep.subr.mxu0 %v514
        %525 = vmatpush1.msra.mxu0 %v513
        %526 = vmatprep.subr.mxu0 0.0
        %527 = vmatpush1.msra.mxu0 0.0
        %528 = vmatprep.subr.mxu0 0.0
        %529 = vmatpush1.msra.mxu0 0.0
        %530 = vmatprep.subr.mxu0 0.0
        %531 = vmatpush1.msra.mxu0 0.0
        %532 = vmatprep.subr.mxu0 0.0
        %533 = vmatpush1.msra.mxu0 0.0
        %534 = vmatprep.subr.mxu0 0.0
        %535 = vmatpush1.msra.mxu0 0.0
        %536 = vmatprep.subr.mxu0 0.0
        %537 = vmatpush1.msra.mxu0 0.0
        %538 = vmatprep.subr.mxu0 0.0
        %539 = vmatpush1.msra.mxu0 0.0
        %540 = vmatprep.subr.mxu0 0.0
        %541 = vmatpush1.msra.mxu0 0.0
        %542 = vmatprep.subr.mxu0 0.0
        %543 = vmatpush1.msra.mxu0 0.0
        %544 = vmatprep.subr.mxu0 0.0
        %545 = vmatpush1.msra.mxu0 0.0
        %546 = vmatprep.subr.mxu0 0.0
        %547 = vmatpush1.msra.mxu0 0.0
        %548 = vmatprep.subr.mxu0 0.0
        %549 = vmatpush1.msra.mxu0 0.0
        %550 = vmatprep.subr.mxu0 0.0
        %551 = vmatpush1.msra.mxu0 0.0
        %552 = vmatprep.subr.mxu0 0.0
        %553 = vmatpush1.msra.mxu0 0.0
        %554 = vmatprep.subr.mxu0 0.0
        %555 = vmatpush1.msra.mxu0 0.0
        %556 = vmatprep.subr.mxu0 0.0
        %557 = vmatpush1.msra.mxu0 0.0
        %558 = vmatprep.subr.mxu0 0.0
        %559 = vmatpush1.msra.mxu0 0.0
        %560 = vmatprep.subr.mxu0 0.0
        %561 = vmatpush1.msra.mxu0 0.0
        %562 = vmatprep.subr.mxu0 0.0
        %563 = vmatpush1.msra.mxu0 0.0
        %564 = vmatprep.subr.mxu0 0.0
        %565 = vmatpush1.msra.mxu0 0.0
        %566 = vmatprep.subr.mxu0 0.0
        %567 = vmatpush1.msra.mxu0 0.0
        %568 = vmatprep.subr.mxu0 0.0
        %569 = vmatpush1.msra.mxu0 0.0
        %570 = vmatprep.subr.mxu0 0.0
        %571 = vmatpush1.msra.mxu0 0.0
        %572 = vmatprep.subr.mxu0 0.0
        %573 = vmatpush1.msra.mxu0 0.0
        %574 = vmatprep.subr.mxu0 0.0
        %575 = vmatpush1.msra.mxu0 0.0
        %576 = vmatprep.subr.mxu0 0.0
        %577 = vmatpush1.msra.mxu0 0.0
        %578 = vmatprep.subr.mxu0 0.0
        %579 = vmatpush1.msra.mxu0 0.0
        %580 = vmatprep.subr.mxu0 0.0
        %581 = vmatpush1.msra.mxu0 0.0
        %582 = vmatprep.subr.mxu0 0.0
        %583 = vmatpush1.msra.mxu0 0.0
        %584 = vmatprep.subr.mxu0 0.0
        %585 = vmatpush1.msra.mxu0 0.0
        %586 = vmatprep.mubr.f32.mxu0 0.0
        %587 = vmatmul.mubr.f32.gmra.mrb[0].mxu0 %v520
        %v588 = vpop.f32.mrb[0].mxu0
        %v589 = vadd.f32 %v517, %v588
        %v590 = vpop.f32.mrb[0].mxu0
        %v591 = vadd.f32 %v517, %v590
        %592 = vdwg.mxu0
        %v593 = vxor.u32 %v589, 2147483648
        %v594 = vxor.u32 %v591, 2147483648
        %v595 = vmul.f32 %v593, 1.442695
        %v596 = vpow.pop %v595
        %v597 = vmul.f32 %v594, 1.442695
        %v598 = vpow.pop %v597
        %v599 = vadd.f32 %v596, 1.0
        %v600 = vadd.f32 %v598, 1.0
        %v601 = vrcp.pop %v599
        %v602 = vmul.f32 1.0, %v601
        %v603 = vrcp.pop %v600
        %v604 = vmul.f32 1.0, %v603
        %v605 = vlaneseq
        %v606 = vshrl.u32 %v605, 7
        %v607 = vsub.s32 0, %v606
        %v608 = vrot.slane %v602, %v607
        %v609 = vlaneseq
        %v610 = vshrl.u32 %v609, 7
        %v611 = vsub.s32 0, %v610
        %v612 = vrot.slane %v604, %v611
        %v613 = vmul.f32 %v372, %v608
        %v614 = vmul.f32 %v373, %v612
        %v615 = vmul.f32 %v374, %v608
        %v616 = vmul.f32 %v375, %v612
        %v617 = vmul.f32 %v376, %v608
        %v618 = vmul.f32 %v377, %v612
        %v619 = vmul.f32 %v378, %v608
        %v620 = vmul.f32 %v379, %v612
        %v621 = vpack.c.bf16 %v615, %v613
        %v622 = vpack.c.bf16 %v616, %v614
        %v623 = vpack.c.bf16 %v619, %v617
        %v624 = vpack.c.bf16 %v620, %v618
        %v629 = vunpack.c.l.b16 %v621
        %v630 = vunpack.c.l.b16 %v622
        %v631 = vunpack.c.h.b16 %v621
        %v632 = vunpack.c.h.b16 %v622
        %v633 = vunpack.c.l.b16 %v623
        %v634 = vunpack.c.l.b16 %v624
        %v635 = vunpack.c.h.b16 %v623
        %v636 = vunpack.c.h.b16 %v624
        %v637 = vpack.c.b16 %v630, %v629
        %v638 = vpack.c.b16 %v632, %v631
        %v639 = vpack.c.b16 %v634, %v633
        %v640 = vpack.c.b16 %v636, %v635
        %645 = vst [vmem:[%s359] sm:$0xff] %v637
        %646 = vst [vmem:[%s359 + $0x8] sm:$0xff] %v638
        %647 = vst [vmem:[%s359 + $0x10] sm:$0xff] %v639
        %648 = vst [vmem:[%s359 + $0x18] sm:$0xff] %v640
        %s649 = sand.u32 %s211, 1
        %s650 = scalar_lea.sflag [#allocation5], %s649
        %s651 = sand.u32 %s211, 1
        %s652 = smul.addr %s651, 32
        %s653 = scalar_lea.vmem [#allocation8], %s652
        // Predicated region
        $region57: #{tpu_custom_call.1} parent=47 // pred_check
          %p654 = pneg %p221
        $region58: #{tpu_custom_call.1} parent=47 // pred_check_branch
          %656 = sbr.rel (%p654) target = $region60
        $region59: #{tpu_custom_call.1} parent=47 // pred_region
          %s657 = smul.u32 2, %s33
          %s659 = ssub.s32 512, 512
          %660 = vsyncadd %s650, %s659
          %s661 = smul.addr %s32, 8
          %s662 = sadd.s32 %s657, %s661
          %s663 = smul.addr %s662, 64
          %s664 = scalar_lea.hbm %s7, %s663
          %s665 = sshll.u32 %s653, 4
          %s666 = int_to_ptr.vmem [resolvable:$true] %s665
          %671 = dma.vmem_to_hbm [thread:$0]  %s666, 512, %s664, %s650, 128, 128, 8
        $region60: #{tpu_custom_call.1} parent=47 // pred_fallthru
          _
      $region48: #{tpu_custom_call.1} parent=5 // pred_fallthru
        _
      %p672 = scmp.le.s32.totalorder 2, %s23
      // Predicated region
      $region61: #{tpu_custom_call.1} parent=5 // pred_check
        %p673 = pneg %p672
      $region62: #{tpu_custom_call.1} parent=5 // pred_check_branch
        %675 = sbr.rel (%p673) target = $region64
      $region63: #{tpu_custom_call.1} parent=5 // pred_region
        %s676 = ssub.s32 %s23, 2
        // Predicated region
        $region65: #{tpu_custom_call.1} parent=63 // pred_check
          %p677 = pneg %p227
        $region66: #{tpu_custom_call.1} parent=63 // pred_check_branch
          %679 = sbr.rel (%p677) target = $region68
        $region67: #{tpu_custom_call.1} parent=63 // pred_region
          %s680 = sand.u32 %s212, 1
          %s681 = scalar_lea.sflag [#allocation5], %s680
          %s682 = sand.u32 %s212, 1
          %s683 = smul.addr %s682, 32
          %s684 = scalar_lea.vmem [#allocation8], %s683
          %685 = dma.done %s681, 512
        $region68: #{tpu_custom_call.1} parent=63 // pred_fallthru
          _
      $region64: #{tpu_custom_call.1} parent=5 // pred_fallthru
        _
    $region6: #{tpu_custom_call.1} parent=1 // loop_footer
      %s27 = sadd.s32 1, %s23
    $region7: #{tpu_custom_call.1} parent=1 // loop_footer_branch
      %22 = sbr.rel target = $region3
    $region8: #{tpu_custom_call.1} parent=1 // loop_exit
      _
    %686 = vsyncpa [#allocation4], 1
    %s687 = scalar_lea.sflag [#allocation4], 1
    %688 = vsyncpa %s687, 1
    %689 = vsyncpa [#allocation7], 1
    %s690 = scalar_lea.sflag [#allocation7], 1
    %691 = vsyncpa %s690, 1
    %692 = vsyncpa [#allocation5], 1
    %s693 = scalar_lea.sflag [#allocation5], 1
    %694 = vsyncpa %s693, 1

</llo_original>
